<compile_context>
chip_gen: v5e
topology: v5e:2x2
jax: 0.10.0
libtpu: 0.0.40
codegen_flags: <defaults>
</compile_context>

<pallas_src>
import numpy as np
import jax
import jax.numpy as jnp
from jax.experimental import pallas as pl
from jax.experimental.pallas import tpu as pltpu


def _fused_roi_head_kernel(x_ref, w_ref, sb_ref, o_ref, buf_ref):
    # x_ref:   (nb, H, W*C)        lane-dense input images (channels pre-padded)
    # w_ref:   (L, 3*W*C, W*C)     bf16 merged-K block-Toeplitz conv weights
    # sb_ref:  (L, 2, W*C)         folded BN scale (row 0) / bias (row 1)
    # o_ref:   (nb*H, W*C)         lane-dense output block
    # buf_ref: (nb*(H+2), W*C)     per-image activation slabs with 1-row halos
    nb, H, WC = x_ref.shape
    L = w_ref.shape[0]
    Hp = H + 2  # per-image slab height (interior rows 1..H, halos at 0 / H+1)

    # Zero only the 2*nb halo rows; interiors are overwritten right below.
    # (Not gated on program_id==0: with a parallel grid every TensorCore owns
    #  a private scratch and must initialize its own halos.)
    zero_row = jnp.zeros((1, WC), jnp.float32)
    for b in range(nb):
        buf_ref[b * Hp:b * Hp + 1, :] = zero_row
        buf_ref[b * Hp + H + 1:b * Hp + H + 2, :] = zero_row

    # Load the lane-dense input images into the interior rows.
    for b in range(nb):
        buf_ref[b * Hp + 1:b * Hp + 1 + H, :] = x_ref[b]

    for l in range(L):  # statically unrolled over the conv blocks
        # One merged matmul per layer: M = nb*H rows, K = 3*W*C (the three dy
        # taps concatenated along K). bf16 operands, f32 accumulation.
        lhs = jnp.concatenate(
            [jnp.concatenate(
                [buf_ref[b * Hp + dy:b * Hp + dy + H, :] for dy in range(3)],
                axis=-1)
             for b in range(nb)],
            axis=0).astype(jnp.bfloat16)                       # (nb*H, 3*W*C)
        acc = jnp.dot(lhs, w_ref[l], preferred_element_type=jnp.float32)
        # fused BN affine + ReLU epilogue (f32)
        y = jnp.maximum(acc * sb_ref[l, 0:1, :] + sb_ref[l, 1:2, :], 0.0)
        if l + 1 < L:
            for b in range(nb):
                buf_ref[b * Hp + 1:b * Hp + 1 + H, :] = y[b * H:(b + 1) * H]
        else:
            o_ref[...] = y.astype(o_ref.dtype)                 # lane-dense store


def pack_params(params, width):
    """Pre-pack conv weights into merged-K block-Toeplitz form + folded BN affine.

    params: list of (w_hwio (3,3,Cin,Cout), scale (Cout,), bias (Cout,))
    Returns (all_w (L, 3*W*C, W*C) bf16, all_sb (L, 2, W*C) f32).
    """
    C = params[0][0].shape[-1]   # out channels (identical for every block)
    W = width
    # sel[dx, p, w] = 1 iff input column p feeds output column w at tap dx
    # ('same' padding in W: p = w + dx - 1, out-of-range taps dropped).
    sel = np.zeros((3, W, W), np.float32)
    for dx in range(3):
        for w in range(W):
            p = w + dx - 1
            if 0 <= p < W:
                sel[dx, p, w] = 1.0
    sel = jnp.asarray(sel)

    ws, sbs = [], []
    for (w_hwio, scale, bias) in params:
        cin = w_hwio.shape[2]
        if cin < C:  # pad layer-0 input channels up to the common lane-packed C
            w_hwio = jnp.pad(w_hwio, ((0, 0), (0, 0), (0, C - cin), (0, 0)))
        # B[dy, p*C+ci, w*C+co] = w_hwio[dy, p-w+1, ci, co] (0 elsewhere)
        B = jnp.einsum('dpw,ydio->ypiwo', sel, w_hwio).reshape(3, W * C, W * C)
        # merged-K layout: (3*W*C, W*C), dy-major along K; bf16 to halve the DMA
        ws.append(B.reshape(3 * W * C, W * C).astype(jnp.bfloat16))
        sbs.append(jnp.stack([jnp.tile(scale, W), jnp.tile(bias, W)], axis=0))
    return jnp.stack(ws), jnp.stack(sbs)


def _use_batch_parallel_grid():
    """True on chips with >1 TensorCore per device (v7x / v4 / v5p): keep a
    parallel batch grid so the TensorCores each take one image. On single-TC
    chips (v5e/v6e, and anything unknown) fold the batch into matmul M."""
    try:
        kind = jax.devices()[0].device_kind.lower().replace(" ", "")
    except Exception:
        return False
    return any(tag in kind for tag in ("v7", "7x", "v4", "v5p"))


def bignas_roi_head_forward(x_nchw, all_w, all_sb, *, batch_parallel=None):
    """Forward pass of BigNAS_RoI_Head (level 0, num_conv blocks). Returns NCHW."""
    N, Cin, H, W = x_nchw.shape
    L, K3, WC = all_w.shape
    C = WC // W

    if batch_parallel is None:
        batch_parallel = _use_batch_parallel_grid()
    # nb = images folded into one grid step (into the matmul M dimension).
    nb = 1 if (batch_parallel and N > 1) else N
    grid = (N // nb,)

    # NCHW -> lane-dense (N, H, W*C) with channels zero-padded up to C (glue).
    x = jnp.transpose(x_nchw, (0, 2, 3, 1))
    if Cin < C:
        x = jnp.pad(x, ((0, 0), (0, 0), (0, 0), (0, C - Cin)))
    x = x.reshape(N, H, W * C)

    out = pl.pallas_call(
        _fused_roi_head_kernel,
        out_shape=jax.ShapeDtypeStruct((N * H, WC), jnp.float32),
        grid_spec=pltpu.PrefetchScalarGridSpec(
            num_scalar_prefetch=0,
            grid=grid,
            in_specs=[
                pl.BlockSpec((nb, H, WC), lambda g: (g, 0, 0)),
                pl.BlockSpec((L, K3, WC), lambda g: (0, 0, 0)),
                pl.BlockSpec((L, 2, WC), lambda g: (0, 0, 0)),
            ],
            out_specs=pl.BlockSpec((nb * H, WC), lambda g: (g, 0)),
            scratch_shapes=[pltpu.VMEM((nb * (H + 2), WC), jnp.float32)],
        ),
        compiler_params=pltpu.CompilerParams(
            dimension_semantics=("parallel",)),
    )(x, all_w, all_sb)

    out = out.reshape(N, H, W, C)
    return jnp.transpose(out, (0, 3, 1, 2))  # -> NCHW


def make_params(key, inplanes, out_channel, num_conv=4, eps=1e-5):
    """Deterministic synthetic parameters for the num_conv blocks."""
    params = []
    cin = inplanes
    for i in range(num_conv):
        cout = out_channel[i]
        key, kw = jax.random.split(key)
        # Conv weight, no bias (ConvBlock conv has bias=False). HWIO layout.
        w = jax.random.normal(kw, (3, 3, cin, cout), jnp.float32) * 0.1
        # BatchNorm2d default init, eval mode -> folded affine.
        gamma = jnp.ones((cout,), jnp.float32)
        beta = jnp.zeros((cout,), jnp.float32)
        running_mean = jnp.zeros((cout,), jnp.float32)
        running_var = jnp.ones((cout,), jnp.float32)
        scale = gamma / jnp.sqrt(running_var + eps)
        bias = beta - running_mean * scale
        params.append((w, scale, bias))
        cin = cout
    return params


def ref_forward(x_nchw, params, emulate_bf16=False):
    """Pure-JAX reference (lax conv). emulate_bf16=True mimics the kernel's
    bf16-operand / f32-accumulate matmuls for a tight numerical check."""
    y = x_nchw
    for w, scale, bias in params:
        w_oihw = jnp.transpose(w, (3, 2, 0, 1))
        lhs, rhs = y, w_oihw
        if emulate_bf16:
            lhs = lhs.astype(jnp.bfloat16)
            rhs = rhs.astype(jnp.bfloat16)
        y = jax.lax.conv_general_dilated(
            lhs, rhs, window_strides=(1, 1), padding="SAME",
            dimension_numbers=("NCHW", "OIHW", "NCHW"),
            preferred_element_type=jnp.float32,
            precision=jax.lax.Precision.HIGHEST)
        y = y * scale.reshape(1, -1, 1, 1) + bias.reshape(1, -1, 1, 1)
        y = jnp.maximum(y, 0.0)
    return y


if __name__ == "__main__":
    # Small shapes consistent with the module: inplanes=4, out_channel=8 per
    # block, num_conv=4, kernel_size=3, batch=2, spatial=16x16.
    key = jax.random.PRNGKey(0)
    key, kx = jax.random.split(key)

    N, CIN, H, W = 2, 4, 16, 16
    OUT_CHANNEL = [8, 8, 8, 8]
    NUM_CONV = 4

    x = jax.random.normal(kx, (N, CIN, H, W), jnp.float32)
    params = make_params(key, CIN, OUT_CHANNEL, NUM_CONV)
    all_w, all_sb = pack_params(params, W)

    fwd = jax.jit(bignas_roi_head_forward)
    out = jax.block_until_ready(fwd(x, all_w, all_sb))

    ref_bf16 = jax.block_until_ready(ref_forward(x, params, emulate_bf16=True))
    ref_f32 = jax.block_until_ready(ref_forward(x, params, emulate_bf16=False))

    assert out.shape == (N, OUT_CHANNEL[-1], H, W), out.shape
    # Kernel runs its matmuls with bf16 operands (f32 accumulation): check
    # tightly against a bf16-emulated reference and loosely against full f32
    # (tolerance loosened per review for the bf16 weight/activation cast).
    assert jnp.allclose(out, ref_bf16, atol=5e-3, rtol=5e-3), (
        float(jnp.max(jnp.abs(out - ref_bf16))))
    assert jnp.allclose(out, ref_f32, atol=3e-2, rtol=3e-2), (
        float(jnp.max(jnp.abs(out - ref_f32))))

    print("KERNEL_OK")
</pallas_src>

<mosaic_0001>
module attributes {stable_mosaic.version = 11 : i64} {
  func.func @_fused_roi_head_kernel(%arg0: i32, %arg1: memref<2x16x128xf32, #tpu.memory_space<vmem>>, %arg2: memref<4x384x128xbf16, #tpu.memory_space<vmem>>, %arg3: memref<4x2x128xf32, #tpu.memory_space<vmem>>, %arg4: memref<32x128xf32, #tpu.memory_space<vmem>>, %arg5: memref<36x128xf32, #tpu.memory_space<vmem>>) attributes {dimension_semantics = [#tpu.dimension_semantics<parallel>], iteration_bounds = array<i64: 1>, scalar_prefetch = 0 : i64, scratch_operands = 1 : i64, tpu.core_type = #tpu.core_type<tc>, window_params = [{transform_indices = @transform_0, window_bounds = array<i64: 2, 16, 128>}, {pipeline_mode = #tpu.pipeline_mode<synchronous>, transform_indices = @transform_1, window_bounds = array<i64: 4, 384, 128>}, {pipeline_mode = #tpu.pipeline_mode<synchronous>, transform_indices = @transform_2, window_bounds = array<i64: 4, 2, 128>}, {transform_indices = @transform_3, window_bounds = array<i64: 32, 128>}]} {
    %cst = arith.constant 0.000000e+00 : f32
    %0 = vector.broadcast %cst : f32 to vector<1x128xf32>
    %c0 = arith.constant 0 : index
    %c0_0 = arith.constant 0 : index
    %1 = vector.load %arg5[%c0, %c0_0] : memref<36x128xf32, #tpu.memory_space<vmem>>, vector<1x128xf32>
    tpu.vector_store %arg5[%c0, %c0_0], %0 {strides = array<i32>} : memref<36x128xf32, #tpu.memory_space<vmem>>, vector<1x128xf32>,
    %c17 = arith.constant 17 : index
    %c0_1 = arith.constant 0 : index
    %2 = vector.load %arg5[%c17, %c0_1] : memref<36x128xf32, #tpu.memory_space<vmem>>, vector<1x128xf32>
    tpu.vector_store %arg5[%c17, %c0_1], %0 {strides = array<i32>} : memref<36x128xf32, #tpu.memory_space<vmem>>, vector<1x128xf32>,
    %c18 = arith.constant 18 : index
    %c0_2 = arith.constant 0 : index
    %3 = vector.load %arg5[%c18, %c0_2] : memref<36x128xf32, #tpu.memory_space<vmem>>, vector<1x128xf32>
    tpu.vector_store %arg5[%c18, %c0_2], %0 {strides = array<i32>} : memref<36x128xf32, #tpu.memory_space<vmem>>, vector<1x128xf32>,
    %c35 = arith.constant 35 : index
    %c0_3 = arith.constant 0 : index
    %4 = vector.load %arg5[%c35, %c0_3] : memref<36x128xf32, #tpu.memory_space<vmem>>, vector<1x128xf32>
    tpu.vector_store %arg5[%c35, %c0_3], %0 {strides = array<i32>} : memref<36x128xf32, #tpu.memory_space<vmem>>, vector<1x128xf32>,
    %c0_4 = arith.constant 0 : index
    %c0_5 = arith.constant 0 : index
    %c0_6 = arith.constant 0 : index
    %5 = vector.load %arg1[%c0_4, %c0_5, %c0_6] : memref<2x16x128xf32, #tpu.memory_space<vmem>>, vector<1x16x128xf32>
    %6 = vector.shape_cast %5 : vector<1x16x128xf32> to vector<16x128xf32>
    %c1 = arith.constant 1 : index
    %c0_7 = arith.constant 0 : index
    %7 = vector.load %arg5[%c1, %c0_7] : memref<36x128xf32, #tpu.memory_space<vmem>>, vector<16x128xf32>
    tpu.vector_store %arg5[%c1, %c0_7], %6 {strides = array<i32>} : memref<36x128xf32, #tpu.memory_space<vmem>>, vector<16x128xf32>,
    %c1_8 = arith.constant 1 : index
    %c0_9 = arith.constant 0 : index
    %c0_10 = arith.constant 0 : index
    %8 = vector.load %arg1[%c1_8, %c0_9, %c0_10] : memref<2x16x128xf32, #tpu.memory_space<vmem>>, vector<1x16x128xf32>
    %9 = vector.shape_cast %8 : vector<1x16x128xf32> to vector<16x128xf32>
    %c19 = arith.constant 19 : index
    %c0_11 = arith.constant 0 : index
    %10 = vector.load %arg5[%c19, %c0_11] : memref<36x128xf32, #tpu.memory_space<vmem>>, vector<16x128xf32>
    tpu.vector_store %arg5[%c19, %c0_11], %9 {strides = array<i32>} : memref<36x128xf32, #tpu.memory_space<vmem>>, vector<16x128xf32>,
    %c0_12 = arith.constant 0 : index
    %c0_13 = arith.constant 0 : index
    %11 = vector.load %arg5[%c0_12, %c0_13] : memref<36x128xf32, #tpu.memory_space<vmem>>, vector<16x128xf32>
    %c1_14 = arith.constant 1 : index
    %c0_15 = arith.constant 0 : index
    %12 = vector.load %arg5[%c1_14, %c0_15] : memref<36x128xf32, #tpu.memory_space<vmem>>, vector<16x128xf32>
    %c2 = arith.constant 2 : index
    %c0_16 = arith.constant 0 : index
    %13 = vector.load %arg5[%c2, %c0_16] : memref<36x128xf32, #tpu.memory_space<vmem>>, vector<16x128xf32>
    %14 = tpu.concatenate %11, %12, %13 in 1 : vector<16x128xf32>, vector<16x128xf32>, vector<16x128xf32> -> vector<16x384xf32>
    %c18_17 = arith.constant 18 : index
    %c0_18 = arith.constant 0 : index
    %15 = vector.load %arg5[%c18_17, %c0_18] : memref<36x128xf32, #tpu.memory_space<vmem>>, vector<16x128xf32>
    %c19_19 = arith.constant 19 : index
    %c0_20 = arith.constant 0 : index
    %16 = vector.load %arg5[%c19_19, %c0_20] : memref<36x128xf32, #tpu.memory_space<vmem>>, vector<16x128xf32>
    %c20 = arith.constant 20 : index
    %c0_21 = arith.constant 0 : index
    %17 = vector.load %arg5[%c20, %c0_21] : memref<36x128xf32, #tpu.memory_space<vmem>>, vector<16x128xf32>
    %18 = tpu.concatenate %15, %16, %17 in 1 : vector<16x128xf32>, vector<16x128xf32>, vector<16x128xf32> -> vector<16x384xf32>
    %19 = tpu.concatenate %14, %18 in 0 : vector<16x384xf32>, vector<16x384xf32> -> vector<32x384xf32>
    %20 = arith.truncf %19 : vector<32x384xf32> to vector<32x384xbf16>
    %c0_22 = arith.constant 0 : index
    %c0_23 = arith.constant 0 : index
    %c0_24 = arith.constant 0 : index
    %21 = vector.load %arg2[%c0_22, %c0_23, %c0_24] : memref<4x384x128xbf16, #tpu.memory_space<vmem>>, vector<1x384x128xbf16>
    %22 = vector.shape_cast %21 : vector<1x384x128xbf16> to vector<384x128xbf16>
    %cst_25 = arith.constant dense<0.000000e+00> : vector<32x128xf32>
    %23 = tpu.matmul %20, %22, %cst_25 {dimension_numbers = #tpu.dot_dimension_numbers<[1], [0], [0], [1], [0, 0, 1, 1], [], []>} : vector<32x384xbf16>, vector<384x128xbf16>, vector<32x128xf32> -> vector<32x128xf32>
    %c0_26 = arith.constant 0 : index
    %c0_27 = arith.constant 0 : index
    %c0_28 = arith.constant 0 : index
    %24 = vector.load %arg3[%c0_26, %c0_27, %c0_28] : memref<4x2x128xf32, #tpu.memory_space<vmem>>, vector<1x1x128xf32>
    %25 = vector.shape_cast %24 : vector<1x1x128xf32> to vector<1x128xf32>
    %26 = vector.broadcast %25 : vector<1x128xf32> to vector<32x128xf32>
    %27 = arith.mulf %23, %26 : vector<32x128xf32>
    %c0_29 = arith.constant 0 : index
    %c1_30 = arith.constant 1 : index
    %c0_31 = arith.constant 0 : index
    %28 = vector.load %arg3[%c0_29, %c1_30, %c0_31] : memref<4x2x128xf32, #tpu.memory_space<vmem>>, vector<1x1x128xf32>
    %29 = vector.shape_cast %28 : vector<1x1x128xf32> to vector<1x128xf32>
    %30 = vector.broadcast %29 : vector<1x128xf32> to vector<32x128xf32>
    %31 = arith.addf %27, %30 : vector<32x128xf32>
    %cst_32 = arith.constant 0.000000e+00 : f32
    %32 = vector.broadcast %cst_32 : f32 to vector<32x128xf32>
    %33 = arith.maximumf %31, %32 : vector<32x128xf32>
    %34 = vector.extract_strided_slice %33 {offsets = [0, 0], sizes = [16, 128], strides = [1, 1]} : vector<32x128xf32> to vector<16x128xf32>
    %c1_33 = arith.constant 1 : index
    %c0_34 = arith.constant 0 : index
    %35 = vector.load %arg5[%c1_33, %c0_34] : memref<36x128xf32, #tpu.memory_space<vmem>>, vector<16x128xf32>
    tpu.vector_store %arg5[%c1_33, %c0_34], %34 {strides = array<i32>} : memref<36x128xf32, #tpu.memory_space<vmem>>, vector<16x128xf32>,
    %36 = vector.extract_strided_slice %33 {offsets = [16, 0], sizes = [16, 128], strides = [1, 1]} : vector<32x128xf32> to vector<16x128xf32>
    %c19_35 = arith.constant 19 : index
    %c0_36 = arith.constant 0 : index
    %37 = vector.load %arg5[%c19_35, %c0_36] : memref<36x128xf32, #tpu.memory_space<vmem>>, vector<16x128xf32>
    tpu.vector_store %arg5[%c19_35, %c0_36], %36 {strides = array<i32>} : memref<36x128xf32, #tpu.memory_space<vmem>>, vector<16x128xf32>,
    %c0_37 = arith.constant 0 : index
    %c0_38 = arith.constant 0 : index
    %38 = vector.load %arg5[%c0_37, %c0_38] : memref<36x128xf32, #tpu.memory_space<vmem>>, vector<16x128xf32>
    %c1_39 = arith.constant 1 : index
    %c0_40 = arith.constant 0 : index
    %39 = vector.load %arg5[%c1_39, %c0_40] : memref<36x128xf32, #tpu.memory_space<vmem>>, vector<16x128xf32>
    %c2_41 = arith.constant 2 : index
    %c0_42 = arith.constant 0 : index
    %40 = vector.load %arg5[%c2_41, %c0_42] : memref<36x128xf32, #tpu.memory_space<vmem>>, vector<16x128xf32>
    %41 = tpu.concatenate %38, %39, %40 in 1 : vector<16x128xf32>, vector<16x128xf32>, vector<16x128xf32> -> vector<16x384xf32>
    %c18_43 = arith.constant 18 : index
    %c0_44 = arith.constant 0 : index
    %42 = vector.load %arg5[%c18_43, %c0_44] : memref<36x128xf32, #tpu.memory_space<vmem>>, vector<16x128xf32>
    %c19_45 = arith.constant 19 : index
    %c0_46 = arith.constant 0 : index
    %43 = vector.load %arg5[%c19_45, %c0_46] : memref<36x128xf32, #tpu.memory_space<vmem>>, vector<16x128xf32>
    %c20_47 = arith.constant 20 : index
    %c0_48 = arith.constant 0 : index
    %44 = vector.load %arg5[%c20_47, %c0_48] : memref<36x128xf32, #tpu.memory_space<vmem>>, vector<16x128xf32>
    %45 = tpu.concatenate %42, %43, %44 in 1 : vector<16x128xf32>, vector<16x128xf32>, vector<16x128xf32> -> vector<16x384xf32>
    %46 = tpu.concatenate %41, %45 in 0 : vector<16x384xf32>, vector<16x384xf32> -> vector<32x384xf32>
    %47 = arith.truncf %46 : vector<32x384xf32> to vector<32x384xbf16>
    %c1_49 = arith.constant 1 : index
    %c0_50 = arith.constant 0 : index
    %c0_51 = arith.constant 0 : index
    %48 = vector.load %arg2[%c1_49, %c0_50, %c0_51] : memref<4x384x128xbf16, #tpu.memory_space<vmem>>, vector<1x384x128xbf16>
    %49 = vector.shape_cast %48 : vector<1x384x128xbf16> to vector<384x128xbf16>
    %cst_52 = arith.constant dense<0.000000e+00> : vector<32x128xf32>
    %50 = tpu.matmul %47, %49, %cst_52 {dimension_numbers = #tpu.dot_dimension_numbers<[1], [0], [0], [1], [0, 0, 1, 1], [], []>} : vector<32x384xbf16>, vector<384x128xbf16>, vector<32x128xf32> -> vector<32x128xf32>
    %c1_53 = arith.constant 1 : index
    %c0_54 = arith.constant 0 : index
    %c0_55 = arith.constant 0 : index
    %51 = vector.load %arg3[%c1_53, %c0_54, %c0_55] : memref<4x2x128xf32, #tpu.memory_space<vmem>>, vector<1x1x128xf32>
    %52 = vector.shape_cast %51 : vector<1x1x128xf32> to vector<1x128xf32>
    %53 = vector.broadcast %52 : vector<1x128xf32> to vector<32x128xf32>
    %54 = arith.mulf %50, %53 : vector<32x128xf32>
    %c1_56 = arith.constant 1 : index
    %c1_57 = arith.constant 1 : index
    %c0_58 = arith.constant 0 : index
    %55 = vector.load %arg3[%c1_56, %c1_57, %c0_58] : memref<4x2x128xf32, #tpu.memory_space<vmem>>, vector<1x1x128xf32>
    %56 = vector.shape_cast %55 : vector<1x1x128xf32> to vector<1x128xf32>
    %57 = vector.broadcast %56 : vector<1x128xf32> to vector<32x128xf32>
    %58 = arith.addf %54, %57 : vector<32x128xf32>
    %cst_59 = arith.constant 0.000000e+00 : f32
    %59 = vector.broadcast %cst_59 : f32 to vector<32x128xf32>
    %60 = arith.maximumf %58, %59 : vector<32x128xf32>
    %61 = vector.extract_strided_slice %60 {offsets = [0, 0], sizes = [16, 128], strides = [1, 1]} : vector<32x128xf32> to vector<16x128xf32>
    %c1_60 = arith.constant 1 : index
    %c0_61 = arith.constant 0 : index
    %62 = vector.load %arg5[%c1_60, %c0_61] : memref<36x128xf32, #tpu.memory_space<vmem>>, vector<16x128xf32>
    tpu.vector_store %arg5[%c1_60, %c0_61], %61 {strides = array<i32>} : memref<36x128xf32, #tpu.memory_space<vmem>>, vector<16x128xf32>,
    %63 = vector.extract_strided_slice %60 {offsets = [16, 0], sizes = [16, 128], strides = [1, 1]} : vector<32x128xf32> to vector<16x128xf32>
    %c19_62 = arith.constant 19 : index
    %c0_63 = arith.constant 0 : index
    %64 = vector.load %arg5[%c19_62, %c0_63] : memref<36x128xf32, #tpu.memory_space<vmem>>, vector<16x128xf32>
    tpu.vector_store %arg5[%c19_62, %c0_63], %63 {strides = array<i32>} : memref<36x128xf32, #tpu.memory_space<vmem>>, vector<16x128xf32>,
    %c0_64 = arith.constant 0 : index
    %c0_65 = arith.constant 0 : index
    %65 = vector.load %arg5[%c0_64, %c0_65] : memref<36x128xf32, #tpu.memory_space<vmem>>, vector<16x128xf32>
    %c1_66 = arith.constant 1 : index
    %c0_67 = arith.constant 0 : index
    %66 = vector.load %arg5[%c1_66, %c0_67] : memref<36x128xf32, #tpu.memory_space<vmem>>, vector<16x128xf32>
    %c2_68 = arith.constant 2 : index
    %c0_69 = arith.constant 0 : index
    %67 = vector.load %arg5[%c2_68, %c0_69] : memref<36x128xf32, #tpu.memory_space<vmem>>, vector<16x128xf32>
    %68 = tpu.concatenate %65, %66, %67 in 1 : vector<16x128xf32>, vector<16x128xf32>, vector<16x128xf32> -> vector<16x384xf32>
    %c18_70 = arith.constant 18 : index
    %c0_71 = arith.constant 0 : index
    %69 = vector.load %arg5[%c18_70, %c0_71] : memref<36x128xf32, #tpu.memory_space<vmem>>, vector<16x128xf32>
    %c19_72 = arith.constant 19 : index
    %c0_73 = arith.constant 0 : index
    %70 = vector.load %arg5[%c19_72, %c0_73] : memref<36x128xf32, #tpu.memory_space<vmem>>, vector<16x128xf32>
    %c20_74 = arith.constant 20 : index
    %c0_75 = arith.constant 0 : index
    %71 = vector.load %arg5[%c20_74, %c0_75] : memref<36x128xf32, #tpu.memory_space<vmem>>, vector<16x128xf32>
    %72 = tpu.concatenate %69, %70, %71 in 1 : vector<16x128xf32>, vector<16x128xf32>, vector<16x128xf32> -> vector<16x384xf32>
    %73 = tpu.concatenate %68, %72 in 0 : vector<16x384xf32>, vector<16x384xf32> -> vector<32x384xf32>
    %74 = arith.truncf %73 : vector<32x384xf32> to vector<32x384xbf16>
    %c2_76 = arith.constant 2 : index
    %c0_77 = arith.constant 0 : index
    %c0_78 = arith.constant 0 : index
    %75 = vector.load %arg2[%c2_76, %c0_77, %c0_78] : memref<4x384x128xbf16, #tpu.memory_space<vmem>>, vector<1x384x128xbf16>
    %76 = vector.shape_cast %75 : vector<1x384x128xbf16> to vector<384x128xbf16>
    %cst_79 = arith.constant dense<0.000000e+00> : vector<32x128xf32>
    %77 = tpu.matmul %74, %76, %cst_79 {dimension_numbers = #tpu.dot_dimension_numbers<[1], [0], [0], [1], [0, 0, 1, 1], [], []>} : vector<32x384xbf16>, vector<384x128xbf16>, vector<32x128xf32> -> vector<32x128xf32>
    %c2_80 = arith.constant 2 : index
    %c0_81 = arith.constant 0 : index
    %c0_82 = arith.constant 0 : index
    %78 = vector.load %arg3[%c2_80, %c0_81, %c0_82] : memref<4x2x128xf32, #tpu.memory_space<vmem>>, vector<1x1x128xf32>
    %79 = vector.shape_cast %78 : vector<1x1x128xf32> to vector<1x128xf32>
    %80 = vector.broadcast %79 : vector<1x128xf32> to vector<32x128xf32>
    %81 = arith.mulf %77, %80 : vector<32x128xf32>
    %c2_83 = arith.constant 2 : index
    %c1_84 = arith.constant 1 : index
    %c0_85 = arith.constant 0 : index
    %82 = vector.load %arg3[%c2_83, %c1_84, %c0_85] : memref<4x2x128xf32, #tpu.memory_space<vmem>>, vector<1x1x128xf32>
    %83 = vector.shape_cast %82 : vector<1x1x128xf32> to vector<1x128xf32>
    %84 = vector.broadcast %83 : vector<1x128xf32> to vector<32x128xf32>
    %85 = arith.addf %81, %84 : vector<32x128xf32>
    %cst_86 = arith.constant 0.000000e+00 : f32
    %86 = vector.broadcast %cst_86 : f32 to vector<32x128xf32>
    %87 = arith.maximumf %85, %86 : vector<32x128xf32>
    %88 = vector.extract_strided_slice %87 {offsets = [0, 0], sizes = [16, 128], strides = [1, 1]} : vector<32x128xf32> to vector<16x128xf32>
    %c1_87 = arith.constant 1 : index
    %c0_88 = arith.constant 0 : index
    %89 = vector.load %arg5[%c1_87, %c0_88] : memref<36x128xf32, #tpu.memory_space<vmem>>, vector<16x128xf32>
    tpu.vector_store %arg5[%c1_87, %c0_88], %88 {strides = array<i32>} : memref<36x128xf32, #tpu.memory_space<vmem>>, vector<16x128xf32>,
    %90 = vector.extract_strided_slice %87 {offsets = [16, 0], sizes = [16, 128], strides = [1, 1]} : vector<32x128xf32> to vector<16x128xf32>
    %c19_89 = arith.constant 19 : index
    %c0_90 = arith.constant 0 : index
    %91 = vector.load %arg5[%c19_89, %c0_90] : memref<36x128xf32, #tpu.memory_space<vmem>>, vector<16x128xf32>
    tpu.vector_store %arg5[%c19_89, %c0_90], %90 {strides = array<i32>} : memref<36x128xf32, #tpu.memory_space<vmem>>, vector<16x128xf32>,
    %c0_91 = arith.constant 0 : index
    %c0_92 = arith.constant 0 : index
    %92 = vector.load %arg5[%c0_91, %c0_92] : memref<36x128xf32, #tpu.memory_space<vmem>>, vector<16x128xf32>
    %c1_93 = arith.constant 1 : index
    %c0_94 = arith.constant 0 : index
    %93 = vector.load %arg5[%c1_93, %c0_94] : memref<36x128xf32, #tpu.memory_space<vmem>>, vector<16x128xf32>
    %c2_95 = arith.constant 2 : index
    %c0_96 = arith.constant 0 : index
    %94 = vector.load %arg5[%c2_95, %c0_96] : memref<36x128xf32, #tpu.memory_space<vmem>>, vector<16x128xf32>
    %95 = tpu.concatenate %92, %93, %94 in 1 : vector<16x128xf32>, vector<16x128xf32>, vector<16x128xf32> -> vector<16x384xf32>
    %c18_97 = arith.constant 18 : index
    %c0_98 = arith.constant 0 : index
    %96 = vector.load %arg5[%c18_97, %c0_98] : memref<36x128xf32, #tpu.memory_space<vmem>>, vector<16x128xf32>
    %c19_99 = arith.constant 19 : index
    %c0_100 = arith.constant 0 : index
    %97 = vector.load %arg5[%c19_99, %c0_100] : memref<36x128xf32, #tpu.memory_space<vmem>>, vector<16x128xf32>
    %c20_101 = arith.constant 20 : index
    %c0_102 = arith.constant 0 : index
    %98 = vector.load %arg5[%c20_101, %c0_102] : memref<36x128xf32, #tpu.memory_space<vmem>>, vector<16x128xf32>
    %99 = tpu.concatenate %96, %97, %98 in 1 : vector<16x128xf32>, vector<16x128xf32>, vector<16x128xf32> -> vector<16x384xf32>
    %100 = tpu.concatenate %95, %99 in 0 : vector<16x384xf32>, vector<16x384xf32> -> vector<32x384xf32>
    %101 = arith.truncf %100 : vector<32x384xf32> to vector<32x384xbf16>
    %c3 = arith.constant 3 : index
    %c0_103 = arith.constant 0 : index
    %c0_104 = arith.constant 0 : index
    %102 = vector.load %arg2[%c3, %c0_103, %c0_104] : memref<4x384x128xbf16, #tpu.memory_space<vmem>>, vector<1x384x128xbf16>
    %103 = vector.shape_cast %102 : vector<1x384x128xbf16> to vector<384x128xbf16>
    %cst_105 = arith.constant dense<0.000000e+00> : vector<32x128xf32>
    %104 = tpu.matmul %101, %103, %cst_105 {dimension_numbers = #tpu.dot_dimension_numbers<[1], [0], [0], [1], [0, 0, 1, 1], [], []>} : vector<32x384xbf16>, vector<384x128xbf16>, vector<32x128xf32> -> vector<32x128xf32>
    %c3_106 = arith.constant 3 : index
    %c0_107 = arith.constant 0 : index
    %c0_108 = arith.constant 0 : index
    %105 = vector.load %arg3[%c3_106, %c0_107, %c0_108] : memref<4x2x128xf32, #tpu.memory_space<vmem>>, vector<1x1x128xf32>
    %106 = vector.shape_cast %105 : vector<1x1x128xf32> to vector<1x128xf32>
    %107 = vector.broadcast %106 : vector<1x128xf32> to vector<32x128xf32>
    %108 = arith.mulf %104, %107 : vector<32x128xf32>
    %c3_109 = arith.constant 3 : index
    %c1_110 = arith.constant 1 : index
    %c0_111 = arith.constant 0 : index
    %109 = vector.load %arg3[%c3_109, %c1_110, %c0_111] : memref<4x2x128xf32, #tpu.memory_space<vmem>>, vector<1x1x128xf32>
    %110 = vector.shape_cast %109 : vector<1x1x128xf32> to vector<1x128xf32>
    %111 = vector.broadcast %110 : vector<1x128xf32> to vector<32x128xf32>
    %112 = arith.addf %108, %111 : vector<32x128xf32>
    %cst_112 = arith.constant 0.000000e+00 : f32
    %113 = vector.broadcast %cst_112 : f32 to vector<32x128xf32>
    %114 = arith.maximumf %112, %113 : vector<32x128xf32>
    %c0_113 = arith.constant 0 : index
    %c0_114 = arith.constant 0 : index
    %115 = vector.load %arg4[%c0_113, %c0_114] : memref<32x128xf32, #tpu.memory_space<vmem>>, vector<32x128xf32>
    tpu.vector_store %arg4[%c0_113, %c0_114], %114 {strides = array<i32>} : memref<32x128xf32, #tpu.memory_space<vmem>>, vector<32x128xf32>,
    return
  }
  func.func @transform_0(%arg0: i32) -> (i32, i32, i32) {
    %c0_i32 = arith.constant 0 : i32
    %c0_i32_0 = arith.constant 0 : i32
    %c0_i32_1 = arith.constant 0 : i32
    return %arg0, %c0_i32, %c0_i32_0 : i32, i32, i32
  }
  func.func @transform_1(%arg0: i32) -> (i32, i32, i32) {
    %c0_i32 = arith.constant 0 : i32
    %c0_i32_0 = arith.constant 0 : i32
    %c0_i32_1 = arith.constant 0 : i32
    %c0_i32_2 = arith.constant 0 : i32
    return %c0_i32, %c0_i32_0, %c0_i32_1 : i32, i32, i32
  }
  func.func @transform_2(%arg0: i32) -> (i32, i32, i32) {
    %c0_i32 = arith.constant 0 : i32
    %c0_i32_0 = arith.constant 0 : i32
    %c0_i32_1 = arith.constant 0 : i32
    %c0_i32_2 = arith.constant 0 : i32
    return %c0_i32, %c0_i32_0, %c0_i32_1 : i32, i32, i32
  }
  func.func @transform_3(%arg0: i32) -> (i32, i32) {
    %c0_i32 = arith.constant 0 : i32
    %c0_i32_0 = arith.constant 0 : i32
    return %arg0, %c0_i32 : i32, i32
  }
}

</mosaic_0001>

<llo_original>
// kernel: bignas_roi_head_forward.1
$region0: #{bignas_roi_head_forward.1}
  #allocation0 [shape = 'u32[]', space=smem, size = 0x4, offset = 0x4, fixed_abs, tag = 'smem constant byte address 0x4 - core index']
  #allocation1 [shape = 'u32[72,128]{1,0:T(1,128)}', space=vmem, size = 0x9000, scoped, tag = 'internal scratch']
  #allocation2 [shape = 'f32[36,128]{1,0:T(8,128)}', space=vmem, size = 0x5000, scoped, tag = 'scratch operand']
  %s0 = inlined_call_operand.vmem [shape: f32[2,16,128], index: 0, kind: input, shape index: {}]
  %s1 = inlined_call_operand.vmem [shape: bf16[4,384,128], index: 1, kind: input, shape index: {}]
  %s2 = inlined_call_operand.vmem [shape: f32[4,2,128], index: 2, kind: input, shape index: {}]
  %s3 = inlined_call_operand.vmem [shape: f32[32,128], index: 3, kind: output, shape index: {}]
  %s4 = sld [smem:[#allocation0]]
  $region22: #{bignas_roi_head_forward.1} parent=0
    _
  %s6 = ssub.s32 1, %s4
  %s7 = scalar_select 0, %s6, %s4
  // Predicated region
  $region2: #{bignas_roi_head_forward.1} parent=0 // pred_check
    _
  $region3: #{bignas_roi_head_forward.1} parent=0 // pred_check_branch
    %9 = sbr.rel (0) target = $region5
  $region4: #{bignas_roi_head_forward.1} parent=0 // pred_region
    _
  $region5: #{bignas_roi_head_forward.1} parent=0 // pred_fallthru
    _
  // Predicated region
  $region6: #{bignas_roi_head_forward.1} parent=0 // pred_check
    _
  $region7: #{bignas_roi_head_forward.1} parent=0 // pred_check_branch
    %11 = sbr.rel (0) target = $region9
  $region8: #{bignas_roi_head_forward.1} parent=0 // pred_region
    _
  $region9: #{bignas_roi_head_forward.1} parent=0 // pred_fallthru
    _
  // Predicated region
  $region10: #{bignas_roi_head_forward.1} parent=0 // pred_check
    _
  $region11: #{bignas_roi_head_forward.1} parent=0 // pred_check_branch
    %13 = sbr.rel (0) target = $region13
  $region12: #{bignas_roi_head_forward.1} parent=0 // pred_region
    _
  $region13: #{bignas_roi_head_forward.1} parent=0 // pred_fallthru
    _
  %14 = vst [vmem:[#allocation2] sm:$0x1] 0.0
  %15 = vst [vmem:[#allocation2 + $0x11] sm:$0x1] 0.0
  %16 = vst [vmem:[#allocation2 + $0x12] sm:$0x1] 0.0
  %17 = vst [vmem:[#allocation2 + $0x23] sm:$0x1] 0.0
  %v18 = vld [vmem:[%s0] sm:$0xff]
  %v19 = vld [vmem:[%s0 + $0x8] sm:$0xff]
  %20 = vst [vmem:[#allocation2 + $0x1] sm:$0xff] %v18
  %21 = vst [vmem:[#allocation2 + $0x9] sm:$0xff] %v19
  %s22 = scalar_lea.vmem %s0, 16
  %v23 = vld [vmem:[%s22] sm:$0xff]
  %v24 = vld [vmem:[%s22 + $0x8] sm:$0xff]
  %25 = vst [vmem:[#allocation2 + $0x13] sm:$0xff] %v23
  %26 = vst [vmem:[#allocation2 + $0x1b] sm:$0xff] %v24
  %v27 = vld [vmem:[#allocation2] sm:$0xff]
  %v28 = vld [vmem:[#allocation2 + $0x8] sm:$0xff]
  %v29 = vld [vmem:[#allocation2 + $0x1] sm:$0xff]
  %v30 = vld [vmem:[#allocation2 + $0x9] sm:$0xff]
  %v31 = vld [vmem:[#allocation2 + $0x2] sm:$0xff]
  %v32 = vld [vmem:[#allocation2 + $0xa] sm:$0xff]
  %v33 = vld [vmem:[#allocation2 + $0x12] sm:$0xff]
  %v34 = vld [vmem:[#allocation2 + $0x1a] sm:$0xff]
  %v35 = vld [vmem:[#allocation2 + $0x13] sm:$0xff]
  %v36 = vld [vmem:[#allocation2 + $0x1b] sm:$0xff]
  %v37 = vld [vmem:[#allocation2 + $0x14] sm:$0xff]
  %v38 = vld [vmem:[#allocation2 + $0x1c] sm:$0xff]
  %v39 = vpack.c.bf16 %v28, %v27
  %v40 = vpack.c.bf16 %v30, %v29
  %v41 = vpack.c.bf16 %v32, %v31
  %v42 = vpack.c.bf16 %v34, %v33
  %v43 = vpack.c.bf16 %v36, %v35
  %v44 = vpack.c.bf16 %v38, %v37
  %v45 = vld [vmem:[%s1] sm:$0xf]
  %v46 = vld [vmem:[%s1 + $0x4] sm:$0xf]
  %v47 = vld [vmem:[%s1 + $0x8] sm:$0xf]
  %v48 = vld [vmem:[%s1 + $0xc] sm:$0xf]
  %v49 = vld [vmem:[%s1 + $0x10] sm:$0xf]
  %v50 = vld [vmem:[%s1 + $0x14] sm:$0xf]
  %v51 = vld [vmem:[%s1 + $0x18] sm:$0xf]
  %v52 = vld [vmem:[%s1 + $0x1c] sm:$0xf]
  %v53 = vld [vmem:[%s1 + $0x20] sm:$0xf]
  %v54 = vld [vmem:[%s1 + $0x24] sm:$0xf]
  %v55 = vld [vmem:[%s1 + $0x28] sm:$0xf]
  %v56 = vld [vmem:[%s1 + $0x2c] sm:$0xf]
  %v57 = vld [vmem:[%s1 + $0x30] sm:$0xf]
  %v58 = vld [vmem:[%s1 + $0x34] sm:$0xf]
  %v59 = vld [vmem:[%s1 + $0x38] sm:$0xf]
  %v60 = vld [vmem:[%s1 + $0x3c] sm:$0xf]
  %v61 = vld [vmem:[%s1 + $0x40] sm:$0xf]
  %v62 = vld [vmem:[%s1 + $0x44] sm:$0xf]
  %v63 = vld [vmem:[%s1 + $0x48] sm:$0xf]
  %v64 = vld [vmem:[%s1 + $0x4c] sm:$0xf]
  %v65 = vld [vmem:[%s1 + $0x50] sm:$0xf]
  %v66 = vld [vmem:[%s1 + $0x54] sm:$0xf]
  %v67 = vld [vmem:[%s1 + $0x58] sm:$0xf]
  %v68 = vld [vmem:[%s1 + $0x5c] sm:$0xf]
  %v69 = vld [vmem:[%s1 + $0x60] sm:$0xf]
  %v70 = vld [vmem:[%s1 + $0x64] sm:$0xf]
  %v71 = vld [vmem:[%s1 + $0x68] sm:$0xf]
  %v72 = vld [vmem:[%s1 + $0x6c] sm:$0xf]
  %v73 = vld [vmem:[%s1 + $0x70] sm:$0xf]
  %v74 = vld [vmem:[%s1 + $0x74] sm:$0xf]
  %v75 = vld [vmem:[%s1 + $0x78] sm:$0xf]
  %v76 = vld [vmem:[%s1 + $0x7c] sm:$0xf]
  %v77 = vld [vmem:[%s1 + $0x80] sm:$0xf]
  %v78 = vld [vmem:[%s1 + $0x84] sm:$0xf]
  %v79 = vld [vmem:[%s1 + $0x88] sm:$0xf]
  %v80 = vld [vmem:[%s1 + $0x8c] sm:$0xf]
  %v81 = vld [vmem:[%s1 + $0x90] sm:$0xf]
  %v82 = vld [vmem:[%s1 + $0x94] sm:$0xf]
  %v83 = vld [vmem:[%s1 + $0x98] sm:$0xf]
  %v84 = vld [vmem:[%s1 + $0x9c] sm:$0xf]
  %v85 = vld [vmem:[%s1 + $0xa0] sm:$0xf]
  %v86 = vld [vmem:[%s1 + $0xa4] sm:$0xf]
  %v87 = vld [vmem:[%s1 + $0xa8] sm:$0xf]
  %v88 = vld [vmem:[%s1 + $0xac] sm:$0xf]
  %v89 = vld [vmem:[%s1 + $0xb0] sm:$0xf]
  %v90 = vld [vmem:[%s1 + $0xb4] sm:$0xf]
  %v91 = vld [vmem:[%s1 + $0xb8] sm:$0xf]
  %v92 = vld [vmem:[%s1 + $0xbc] sm:$0xf]
  %v141 = vunpack.c.l.b16 %v45
  %v142 = vunpack.c.l.b16 %v46
  %v143 = vunpack.c.l.b16 %v47
  %v144 = vunpack.c.l.b16 %v48
  %v145 = vunpack.c.l.b16 %v49
  %v146 = vunpack.c.l.b16 %v50
  %v147 = vunpack.c.l.b16 %v51
  %v148 = vunpack.c.l.b16 %v52
  %v149 = vunpack.c.l.b16 %v53
  %v150 = vunpack.c.l.b16 %v54
  %v151 = vunpack.c.l.b16 %v55
  %v152 = vunpack.c.l.b16 %v56
  %v153 = vunpack.c.l.b16 %v57
  %v154 = vunpack.c.l.b16 %v58
  %v155 = vunpack.c.l.b16 %v59
  %v156 = vunpack.c.l.b16 %v60
  %v157 = vunpack.c.l.b16 %v61
  %v158 = vunpack.c.l.b16 %v62
  %v159 = vunpack.c.l.b16 %v63
  %v160 = vunpack.c.l.b16 %v64
  %v161 = vunpack.c.l.b16 %v65
  %v162 = vunpack.c.l.b16 %v66
  %v163 = vunpack.c.l.b16 %v67
  %v164 = vunpack.c.l.b16 %v68
  %v165 = vunpack.c.l.b16 %v69
  %v166 = vunpack.c.l.b16 %v70
  %v167 = vunpack.c.l.b16 %v71
  %v168 = vunpack.c.l.b16 %v72
  %v169 = vunpack.c.l.b16 %v73
  %v170 = vunpack.c.l.b16 %v74
  %v171 = vunpack.c.l.b16 %v75
  %v172 = vunpack.c.l.b16 %v76
  %v173 = vunpack.c.l.b16 %v77
  %v174 = vunpack.c.l.b16 %v78
  %v175 = vunpack.c.l.b16 %v79
  %v176 = vunpack.c.l.b16 %v80
  %v177 = vunpack.c.l.b16 %v81
  %v178 = vunpack.c.l.b16 %v82
  %v179 = vunpack.c.l.b16 %v83
  %v180 = vunpack.c.l.b16 %v84
  %v181 = vunpack.c.l.b16 %v85
  %v182 = vunpack.c.l.b16 %v86
  %v183 = vunpack.c.l.b16 %v87
  %v184 = vunpack.c.l.b16 %v88
  %v185 = vunpack.c.l.b16 %v89
  %v186 = vunpack.c.l.b16 %v90
  %v187 = vunpack.c.l.b16 %v91
  %v188 = vunpack.c.l.b16 %v92
  %v189 = vpack.c.b16 %v142, %v141
  %v190 = vpack.c.b16 %v144, %v143
  %v191 = vpack.c.b16 %v146, %v145
  %v192 = vpack.c.b16 %v148, %v147
  %v193 = vpack.c.b16 %v150, %v149
  %v194 = vpack.c.b16 %v152, %v151
  %v195 = vpack.c.b16 %v154, %v153
  %v196 = vpack.c.b16 %v156, %v155
  %v197 = vpack.c.b16 %v158, %v157
  %v198 = vpack.c.b16 %v160, %v159
  %v199 = vpack.c.b16 %v162, %v161
  %v200 = vpack.c.b16 %v164, %v163
  %v201 = vpack.c.b16 %v166, %v165
  %v202 = vpack.c.b16 %v168, %v167
  %v203 = vpack.c.b16 %v170, %v169
  %v204 = vpack.c.b16 %v172, %v171
  %v205 = vpack.c.b16 %v174, %v173
  %v206 = vpack.c.b16 %v176, %v175
  %v207 = vpack.c.b16 %v178, %v177
  %v208 = vpack.c.b16 %v180, %v179
  %v209 = vpack.c.b16 %v182, %v181
  %v210 = vpack.c.b16 %v184, %v183
  %v211 = vpack.c.b16 %v186, %v185
  %v212 = vpack.c.b16 %v188, %v187
  %237 = vmatpush.bf16.msra.mxu0 %v196
  %238 = vmatpush.bf16.msra.mxu0 %v195
  %239 = vmatpush.bf16.msra.mxu0 %v194
  %240 = vmatpush.bf16.msra.mxu0 %v193
  %241 = vmatpush.bf16.msra.mxu0 %v192
  %242 = vmatpush.bf16.msra.mxu0 %v191
  %243 = vmatpush.bf16.msra.mxu0 %v190
  %244 = vmatpush.bf16.msra.mxu0 %v189
  %245 = vmatmul.bf16.gmra.mxu0 %v39
  %v246 = vpop.f32.mrf.mxu0
  %v247 = vadd.f32 0.0, %v246
  %v248 = vpop.f32.mrf.mxu0
  %v249 = vadd.f32 0.0, %v248
  %250 = vmatmul.bf16.gmra.mxu0 %v42
  %v251 = vpop.f32.mrf.mxu0
  %v252 = vadd.f32 0.0, %v251
  %v253 = vpop.f32.mrf.mxu0
  %v254 = vadd.f32 0.0, %v253
  %255 = vdwg.mxu0
  %256 = vmatpush.bf16.msra.mxu0 %v204
  %257 = vmatpush.bf16.msra.mxu0 %v203
  %258 = vmatpush.bf16.msra.mxu0 %v202
  %259 = vmatpush.bf16.msra.mxu0 %v201
  %260 = vmatpush.bf16.msra.mxu0 %v200
  %261 = vmatpush.bf16.msra.mxu0 %v199
  %262 = vmatpush.bf16.msra.mxu0 %v198
  %263 = vmatpush.bf16.msra.mxu0 %v197
  %264 = vmatmul.bf16.gmra.mxu0 %v40
  %v265 = vpop.f32.mrf.mxu0
  %v266 = vadd.f32 %v247, %v265
  %v267 = vpop.f32.mrf.mxu0
  %v268 = vadd.f32 %v249, %v267
  %269 = vmatmul.bf16.gmra.mxu0 %v43
  %v270 = vpop.f32.mrf.mxu0
  %v271 = vadd.f32 %v252, %v270
  %v272 = vpop.f32.mrf.mxu0
  %v273 = vadd.f32 %v254, %v272
  %274 = vdwg.mxu0
  %275 = vmatpush.bf16.msra.mxu0 %v212
  %276 = vmatpush.bf16.msra.mxu0 %v211
  %277 = vmatpush.bf16.msra.mxu0 %v210
  %278 = vmatpush.bf16.msra.mxu0 %v209
  %279 = vmatpush.bf16.msra.mxu0 %v208
  %280 = vmatpush.bf16.msra.mxu0 %v207
  %281 = vmatpush.bf16.msra.mxu0 %v206
  %282 = vmatpush.bf16.msra.mxu0 %v205
  %283 = vmatmul.bf16.gmra.mxu0 %v41
  %v284 = vpop.f32.mrf.mxu0
  %v285 = vadd.f32 %v266, %v284
  %v286 = vpop.f32.mrf.mxu0
  %v287 = vadd.f32 %v268, %v286
  %288 = vmatmul.bf16.gmra.mxu0 %v44
  %v289 = vpop.f32.mrf.mxu0
  %v290 = vadd.f32 %v271, %v289
  %v291 = vpop.f32.mrf.mxu0
  %v292 = vadd.f32 %v273, %v291
  %293 = vdwg.mxu0
  %v294 = vld [vmem:[%s2] sm:$0x1]
  %v295 = vperm.slane %v294, 0
  %v296 = vmul.f32 %v285, %v295
  %v297 = vmul.f32 %v287, %v295
  %v298 = vmul.f32 %v290, %v295
  %v299 = vmul.f32 %v292, %v295
  %v300 = vld [vmem:[%s2 + $0x1] sm:$0x1]
  %v301 = vperm.slane %v300, 0
  %v302 = vadd.f32 %v296, %v301
  %v303 = vadd.f32 %v297, %v301
  %v304 = vadd.f32 %v298, %v301
  %v305 = vadd.f32 %v299, %v301
  %v306 = vmax.f32 %v302, 0.0
  %v307 = vmax.f32 %v303, 0.0
  %v308 = vmax.f32 %v304, 0.0
  %v309 = vmax.f32 %v305, 0.0
  %310 = vst [vmem:[#allocation2 + $0x1] sm:$0xff] %v306
  %311 = vst [vmem:[#allocation2 + $0x9] sm:$0xff] %v307
  %312 = vst [vmem:[#allocation2 + $0x13] sm:$0xff] %v308
  %313 = vst [vmem:[#allocation2 + $0x1b] sm:$0xff] %v309
  %v314 = vld [vmem:[#allocation2] sm:$0xff]
  %v315 = vld [vmem:[#allocation2 + $0x8] sm:$0xff]
  %v316 = vld [vmem:[#allocation2 + $0x1] sm:$0xff]
  %v317 = vld [vmem:[#allocation2 + $0x9] sm:$0xff]
  %v318 = vld [vmem:[#allocation2 + $0x2] sm:$0xff]
  %v319 = vld [vmem:[#allocation2 + $0xa] sm:$0xff]
  %v320 = vld [vmem:[#allocation2 + $0x12] sm:$0xff]
  %v321 = vld [vmem:[#allocation2 + $0x1a] sm:$0xff]
  %v322 = vld [vmem:[#allocation2 + $0x13] sm:$0xff]
  %v323 = vld [vmem:[#allocation2 + $0x1b] sm:$0xff]
  %v324 = vld [vmem:[#allocation2 + $0x14] sm:$0xff]
  %v325 = vld [vmem:[#allocation2 + $0x1c] sm:$0xff]
  %v326 = vpack.c.bf16 %v315, %v314
  %v327 = vpack.c.bf16 %v317, %v316
  %v328 = vpack.c.bf16 %v319, %v318
  %v329 = vpack.c.bf16 %v321, %v320
  %v330 = vpack.c.bf16 %v323, %v322
  %v331 = vpack.c.bf16 %v325, %v324
  %s332 = scalar_lea.vmem %s1, 192
  %v333 = vld [vmem:[%s332] sm:$0xf]
  %v334 = vld [vmem:[%s332 + $0x4] sm:$0xf]
  %v335 = vld [vmem:[%s332 + $0x8] sm:$0xf]
  %v336 = vld [vmem:[%s332 + $0xc] sm:$0xf]
  %v337 = vld [vmem:[%s332 + $0x10] sm:$0xf]
  %v338 = vld [vmem:[%s332 + $0x14] sm:$0xf]
  %v339 = vld [vmem:[%s332 + $0x18] sm:$0xf]
  %v340 = vld [vmem:[%s332 + $0x1c] sm:$0xf]
  %v341 = vld [vmem:[%s332 + $0x20] sm:$0xf]
  %v342 = vld [vmem:[%s332 + $0x24] sm:$0xf]
  %v343 = vld [vmem:[%s332 + $0x28] sm:$0xf]
  %v344 = vld [vmem:[%s332 + $0x2c] sm:$0xf]
  %v345 = vld [vmem:[%s332 + $0x30] sm:$0xf]
  %v346 = vld [vmem:[%s332 + $0x34] sm:$0xf]
  %v347 = vld [vmem:[%s332 + $0x38] sm:$0xf]
  %v348 = vld [vmem:[%s332 + $0x3c] sm:$0xf]
  %v349 = vld [vmem:[%s332 + $0x40] sm:$0xf]
  %v350 = vld [vmem:[%s332 + $0x44] sm:$0xf]
  %v351 = vld [vmem:[%s332 + $0x48] sm:$0xf]
  %v352 = vld [vmem:[%s332 + $0x4c] sm:$0xf]
  %v353 = vld [vmem:[%s332 + $0x50] sm:$0xf]
  %v354 = vld [vmem:[%s332 + $0x54] sm:$0xf]
  %v355 = vld [vmem:[%s332 + $0x58] sm:$0xf]
  %v356 = vld [vmem:[%s332 + $0x5c] sm:$0xf]
  %v357 = vld [vmem:[%s332 + $0x60] sm:$0xf]
  %v358 = vld [vmem:[%s332 + $0x64] sm:$0xf]
  %v359 = vld [vmem:[%s332 + $0x68] sm:$0xf]
  %v360 = vld [vmem:[%s332 + $0x6c] sm:$0xf]
  %v361 = vld [vmem:[%s332 + $0x70] sm:$0xf]
  %v362 = vld [vmem:[%s332 + $0x74] sm:$0xf]
  %v363 = vld [vmem:[%s332 + $0x78] sm:$0xf]
  %v364 = vld [vmem:[%s332 + $0x7c] sm:$0xf]
  %v365 = vld [vmem:[%s332 + $0x80] sm:$0xf]
  %v366 = vld [vmem:[%s332 + $0x84] sm:$0xf]
  %v367 = vld [vmem:[%s332 + $0x88] sm:$0xf]
  %v368 = vld [vmem:[%s332 + $0x8c] sm:$0xf]
  %v369 = vld [vmem:[%s332 + $0x90] sm:$0xf]
  %v370 = vld [vmem:[%s332 + $0x94] sm:$0xf]
  %v371 = vld [vmem:[%s332 + $0x98] sm:$0xf]
  %v372 = vld [vmem:[%s332 + $0x9c] sm:$0xf]
  %v373 = vld [vmem:[%s332 + $0xa0] sm:$0xf]
  %v374 = vld [vmem:[%s332 + $0xa4] sm:$0xf]
  %v375 = vld [vmem:[%s332 + $0xa8] sm:$0xf]
  %v376 = vld [vmem:[%s332 + $0xac] sm:$0xf]
  %v377 = vld [vmem:[%s332 + $0xb0] sm:$0xf]
  %v378 = vld [vmem:[%s332 + $0xb4] sm:$0xf]
  %v379 = vld [vmem:[%s332 + $0xb8] sm:$0xf]
  %v380 = vld [vmem:[%s332 + $0xbc] sm:$0xf]
  %v429 = vunpack.c.l.b16 %v333
  %v430 = vunpack.c.l.b16 %v334
  %v431 = vunpack.c.l.b16 %v335
  %v432 = vunpack.c.l.b16 %v336
  %v433 = vunpack.c.l.b16 %v337
  %v434 = vunpack.c.l.b16 %v338
  %v435 = vunpack.c.l.b16 %v339
  %v436 = vunpack.c.l.b16 %v340
  %v437 = vunpack.c.l.b16 %v341
  %v438 = vunpack.c.l.b16 %v342
  %v439 = vunpack.c.l.b16 %v343
  %v440 = vunpack.c.l.b16 %v344
  %v441 = vunpack.c.l.b16 %v345
  %v442 = vunpack.c.l.b16 %v346
  %v443 = vunpack.c.l.b16 %v347
  %v444 = vunpack.c.l.b16 %v348
  %v445 = vunpack.c.l.b16 %v349
  %v446 = vunpack.c.l.b16 %v350
  %v447 = vunpack.c.l.b16 %v351
  %v448 = vunpack.c.l.b16 %v352
  %v449 = vunpack.c.l.b16 %v353
  %v450 = vunpack.c.l.b16 %v354
  %v451 = vunpack.c.l.b16 %v355
  %v452 = vunpack.c.l.b16 %v356
  %v453 = vunpack.c.l.b16 %v357
  %v454 = vunpack.c.l.b16 %v358
  %v455 = vunpack.c.l.b16 %v359
  %v456 = vunpack.c.l.b16 %v360
  %v457 = vunpack.c.l.b16 %v361
  %v458 = vunpack.c.l.b16 %v362
  %v459 = vunpack.c.l.b16 %v363
  %v460 = vunpack.c.l.b16 %v364
  %v461 = vunpack.c.l.b16 %v365
  %v462 = vunpack.c.l.b16 %v366
  %v463 = vunpack.c.l.b16 %v367
  %v464 = vunpack.c.l.b16 %v368
  %v465 = vunpack.c.l.b16 %v369
  %v466 = vunpack.c.l.b16 %v370
  %v467 = vunpack.c.l.b16 %v371
  %v468 = vunpack.c.l.b16 %v372
  %v469 = vunpack.c.l.b16 %v373
  %v470 = vunpack.c.l.b16 %v374
  %v471 = vunpack.c.l.b16 %v375
  %v472 = vunpack.c.l.b16 %v376
  %v473 = vunpack.c.l.b16 %v377
  %v474 = vunpack.c.l.b16 %v378
  %v475 = vunpack.c.l.b16 %v379
  %v476 = vunpack.c.l.b16 %v380
  %v477 = vpack.c.b16 %v430, %v429
  %v478 = vpack.c.b16 %v432, %v431
  %v479 = vpack.c.b16 %v434, %v433
  %v480 = vpack.c.b16 %v436, %v435
  %v481 = vpack.c.b16 %v438, %v437
  %v482 = vpack.c.b16 %v440, %v439
  %v483 = vpack.c.b16 %v442, %v441
  %v484 = vpack.c.b16 %v444, %v443
  %v485 = vpack.c.b16 %v446, %v445
  %v486 = vpack.c.b16 %v448, %v447
  %v487 = vpack.c.b16 %v450, %v449
  %v488 = vpack.c.b16 %v452, %v451
  %v489 = vpack.c.b16 %v454, %v453
  %v490 = vpack.c.b16 %v456, %v455
  %v491 = vpack.c.b16 %v458, %v457
  %v492 = vpack.c.b16 %v460, %v459
  %v493 = vpack.c.b16 %v462, %v461
  %v494 = vpack.c.b16 %v464, %v463
  %v495 = vpack.c.b16 %v466, %v465
  %v496 = vpack.c.b16 %v468, %v467
  %v497 = vpack.c.b16 %v470, %v469
  %v498 = vpack.c.b16 %v472, %v471
  %v499 = vpack.c.b16 %v474, %v473
  %v500 = vpack.c.b16 %v476, %v475
  %525 = vmatpush.bf16.msra.mxu0 %v484
  %526 = vmatpush.bf16.msra.mxu0 %v483
  %527 = vmatpush.bf16.msra.mxu0 %v482
  %528 = vmatpush.bf16.msra.mxu0 %v481
  %529 = vmatpush.bf16.msra.mxu0 %v480
  %530 = vmatpush.bf16.msra.mxu0 %v479
  %531 = vmatpush.bf16.msra.mxu0 %v478
  %532 = vmatpush.bf16.msra.mxu0 %v477
  %533 = vmatmul.bf16.gmra.mxu0 %v326
  %v534 = vpop.f32.mrf.mxu0
  %v535 = vadd.f32 0.0, %v534
  %v536 = vpop.f32.mrf.mxu0
  %v537 = vadd.f32 0.0, %v536
  %538 = vmatmul.bf16.gmra.mxu0 %v329
  %v539 = vpop.f32.mrf.mxu0
  %v540 = vadd.f32 0.0, %v539
  %v541 = vpop.f32.mrf.mxu0
  %v542 = vadd.f32 0.0, %v541
  %543 = vdwg.mxu0
  %544 = vmatpush.bf16.msra.mxu0 %v492
  %545 = vmatpush.bf16.msra.mxu0 %v491
  %546 = vmatpush.bf16.msra.mxu0 %v490
  %547 = vmatpush.bf16.msra.mxu0 %v489
  %548 = vmatpush.bf16.msra.mxu0 %v488
  %549 = vmatpush.bf16.msra.mxu0 %v487
  %550 = vmatpush.bf16.msra.mxu0 %v486
  %551 = vmatpush.bf16.msra.mxu0 %v485
  %552 = vmatmul.bf16.gmra.mxu0 %v327
  %v553 = vpop.f32.mrf.mxu0
  %v554 = vadd.f32 %v535, %v553
  %v555 = vpop.f32.mrf.mxu0
  %v556 = vadd.f32 %v537, %v555
  %557 = vmatmul.bf16.gmra.mxu0 %v330
  %v558 = vpop.f32.mrf.mxu0
  %v559 = vadd.f32 %v540, %v558
  %v560 = vpop.f32.mrf.mxu0
  %v561 = vadd.f32 %v542, %v560
  %562 = vdwg.mxu0
  %563 = vmatpush.bf16.msra.mxu0 %v500
  %564 = vmatpush.bf16.msra.mxu0 %v499
  %565 = vmatpush.bf16.msra.mxu0 %v498
  %566 = vmatpush.bf16.msra.mxu0 %v497
  %567 = vmatpush.bf16.msra.mxu0 %v496
  %568 = vmatpush.bf16.msra.mxu0 %v495
  %569 = vmatpush.bf16.msra.mxu0 %v494
  %570 = vmatpush.bf16.msra.mxu0 %v493
  %571 = vmatmul.bf16.gmra.mxu0 %v328
  %v572 = vpop.f32.mrf.mxu0
  %v573 = vadd.f32 %v554, %v572
  %v574 = vpop.f32.mrf.mxu0
  %v575 = vadd.f32 %v556, %v574
  %576 = vmatmul.bf16.gmra.mxu0 %v331
  %v577 = vpop.f32.mrf.mxu0
  %v578 = vadd.f32 %v559, %v577
  %v579 = vpop.f32.mrf.mxu0
  %v580 = vadd.f32 %v561, %v579
  %581 = vdwg.mxu0
  %s582 = scalar_lea.vmem %s2, 2
  %v583 = vld [vmem:[%s582] sm:$0x1]
  %v584 = vperm.slane %v583, 0
  %v585 = vmul.f32 %v573, %v584
  %v586 = vmul.f32 %v575, %v584
  %v587 = vmul.f32 %v578, %v584
  %v588 = vmul.f32 %v580, %v584
  %v589 = vld [vmem:[%s582 + $0x1] sm:$0x1]
  %v590 = vperm.slane %v589, 0
  %v591 = vadd.f32 %v585, %v590
  %v592 = vadd.f32 %v586, %v590
  %v593 = vadd.f32 %v587, %v590
  %v594 = vadd.f32 %v588, %v590
  %v595 = vmax.f32 %v591, 0.0
  %v596 = vmax.f32 %v592, 0.0
  %v597 = vmax.f32 %v593, 0.0
  %v598 = vmax.f32 %v594, 0.0
  %599 = vst [vmem:[#allocation2 + $0x1] sm:$0xff] %v595
  %600 = vst [vmem:[#allocation2 + $0x9] sm:$0xff] %v596
  %601 = vst [vmem:[#allocation2 + $0x13] sm:$0xff] %v597
  %602 = vst [vmem:[#allocation2 + $0x1b] sm:$0xff] %v598
  %v603 = vld [vmem:[#allocation2] sm:$0xff]
  %v604 = vld [vmem:[#allocation2 + $0x8] sm:$0xff]
  %v605 = vld [vmem:[#allocation2 + $0x1] sm:$0xff]
  %v606 = vld [vmem:[#allocation2 + $0x9] sm:$0xff]
  %v607 = vld [vmem:[#allocation2 + $0x2] sm:$0xff]
  %v608 = vld [vmem:[#allocation2 + $0xa] sm:$0xff]
  %v609 = vld [vmem:[#allocation2 + $0x12] sm:$0xff]
  %v610 = vld [vmem:[#allocation2 + $0x1a] sm:$0xff]
  %v611 = vld [vmem:[#allocation2 + $0x13] sm:$0xff]
  %v612 = vld [vmem:[#allocation2 + $0x1b] sm:$0xff]
  %v613 = vld [vmem:[#allocation2 + $0x14] sm:$0xff]
  %v614 = vld [vmem:[#allocation2 + $0x1c] sm:$0xff]
  %v615 = vpack.c.bf16 %v604, %v603
  %v616 = vpack.c.bf16 %v606, %v605
  %v617 = vpack.c.bf16 %v608, %v607
  %v618 = vpack.c.bf16 %v610, %v609
  %v619 = vpack.c.bf16 %v612, %v611
  %v620 = vpack.c.bf16 %v614, %v613
  %s621 = scalar_lea.vmem %s1, 384
  %v622 = vld [vmem:[%s621] sm:$0xf]
  %v623 = vld [vmem:[%s621 + $0x4] sm:$0xf]
  %v624 = vld [vmem:[%s621 + $0x8] sm:$0xf]
  %v625 = vld [vmem:[%s621 + $0xc] sm:$0xf]
  %v626 = vld [vmem:[%s621 + $0x10] sm:$0xf]
  %v627 = vld [vmem:[%s621 + $0x14] sm:$0xf]
  %v628 = vld [vmem:[%s621 + $0x18] sm:$0xf]
  %v629 = vld [vmem:[%s621 + $0x1c] sm:$0xf]
  %v630 = vld [vmem:[%s621 + $0x20] sm:$0xf]
  %v631 = vld [vmem:[%s621 + $0x24] sm:$0xf]
  %v632 = vld [vmem:[%s621 + $0x28] sm:$0xf]
  %v633 = vld [vmem:[%s621 + $0x2c] sm:$0xf]
  %v634 = vld [vmem:[%s621 + $0x30] sm:$0xf]
  %v635 = vld [vmem:[%s621 + $0x34] sm:$0xf]
  %v636 = vld [vmem:[%s621 + $0x38] sm:$0xf]
  %v637 = vld [vmem:[%s621 + $0x3c] sm:$0xf]
  %v638 = vld [vmem:[%s621 + $0x40] sm:$0xf]
  %v639 = vld [vmem:[%s621 + $0x44] sm:$0xf]
  %v640 = vld [vmem:[%s621 + $0x48] sm:$0xf]
  %v641 = vld [vmem:[%s621 + $0x4c] sm:$0xf]
  %v642 = vld [vmem:[%s621 + $0x50] sm:$0xf]
  %v643 = vld [vmem:[%s621 + $0x54] sm:$0xf]
  %v644 = vld [vmem:[%s621 + $0x58] sm:$0xf]
  %v645 = vld [vmem:[%s621 + $0x5c] sm:$0xf]
  %v646 = vld [vmem:[%s621 + $0x60] sm:$0xf]
  %v647 = vld [vmem:[%s621 + $0x64] sm:$0xf]
  %v648 = vld [vmem:[%s621 + $0x68] sm:$0xf]
  %v649 = vld [vmem:[%s621 + $0x6c] sm:$0xf]
  %v650 = vld [vmem:[%s621 + $0x70] sm:$0xf]
  %v651 = vld [vmem:[%s621 + $0x74] sm:$0xf]
  %v652 = vld [vmem:[%s621 + $0x78] sm:$0xf]
  %v653 = vld [vmem:[%s621 + $0x7c] sm:$0xf]
  %v654 = vld [vmem:[%s621 + $0x80] sm:$0xf]
  %v655 = vld [vmem:[%s621 + $0x84] sm:$0xf]
  %v656 = vld [vmem:[%s621 + $0x88] sm:$0xf]
  %v657 = vld [vmem:[%s621 + $0x8c] sm:$0xf]
  %v658 = vld [vmem:[%s621 + $0x90] sm:$0xf]
  %v659 = vld [vmem:[%s621 + $0x94] sm:$0xf]
  %v660 = vld [vmem:[%s621 + $0x98] sm:$0xf]
  %v661 = vld [vmem:[%s621 + $0x9c] sm:$0xf]
  %v662 = vld [vmem:[%s621 + $0xa0] sm:$0xf]
  %v663 = vld [vmem:[%s621 + $0xa4] sm:$0xf]
  %v664 = vld [vmem:[%s621 + $0xa8] sm:$0xf]
  %v665 = vld [vmem:[%s621 + $0xac] sm:$0xf]
  %v666 = vld [vmem:[%s621 + $0xb0] sm:$0xf]
  %v667 = vld [vmem:[%s621 + $0xb4] sm:$0xf]
  %v668 = vld [vmem:[%s621 + $0xb8] sm:$0xf]
  %v669 = vld [vmem:[%s621 + $0xbc] sm:$0xf]
  %v718 = vunpack.c.l.b16 %v622
  %v719 = vunpack.c.l.b16 %v623
  %v720 = vunpack.c.l.b16 %v624
  %v721 = vunpack.c.l.b16 %v625
  %v722 = vunpack.c.l.b16 %v626
  %v723 = vunpack.c.l.b16 %v627
  %v724 = vunpack.c.l.b16 %v628
  %v725 = vunpack.c.l.b16 %v629
  %v726 = vunpack.c.l.b16 %v630
  %v727 = vunpack.c.l.b16 %v631
  %v728 = vunpack.c.l.b16 %v632
  %v729 = vunpack.c.l.b16 %v633
  %v730 = vunpack.c.l.b16 %v634
  %v731 = vunpack.c.l.b16 %v635
  %v732 = vunpack.c.l.b16 %v636
  %v733 = vunpack.c.l.b16 %v637
  %v734 = vunpack.c.l.b16 %v638
  %v735 = vunpack.c.l.b16 %v639
  %v736 = vunpack.c.l.b16 %v640
  %v737 = vunpack.c.l.b16 %v641
  %v738 = vunpack.c.l.b16 %v642
  %v739 = vunpack.c.l.b16 %v643
  %v740 = vunpack.c.l.b16 %v644
  %v741 = vunpack.c.l.b16 %v645
  %v742 = vunpack.c.l.b16 %v646
  %v743 = vunpack.c.l.b16 %v647
  %v744 = vunpack.c.l.b16 %v648
  %v745 = vunpack.c.l.b16 %v649
  %v746 = vunpack.c.l.b16 %v650
  %v747 = vunpack.c.l.b16 %v651
  %v748 = vunpack.c.l.b16 %v652
  %v749 = vunpack.c.l.b16 %v653
  %v750 = vunpack.c.l.b16 %v654
  %v751 = vunpack.c.l.b16 %v655
  %v752 = vunpack.c.l.b16 %v656
  %v753 = vunpack.c.l.b16 %v657
  %v754 = vunpack.c.l.b16 %v658
  %v755 = vunpack.c.l.b16 %v659
  %v756 = vunpack.c.l.b16 %v660
  %v757 = vunpack.c.l.b16 %v661
  %v758 = vunpack.c.l.b16 %v662
  %v759 = vunpack.c.l.b16 %v663
  %v760 = vunpack.c.l.b16 %v664
  %v761 = vunpack.c.l.b16 %v665
  %v762 = vunpack.c.l.b16 %v666
  %v763 = vunpack.c.l.b16 %v667
  %v764 = vunpack.c.l.b16 %v668
  %v765 = vunpack.c.l.b16 %v669
  %v766 = vpack.c.b16 %v719, %v718
  %v767 = vpack.c.b16 %v721, %v720
  %v768 = vpack.c.b16 %v723, %v722
  %v769 = vpack.c.b16 %v725, %v724
  %v770 = vpack.c.b16 %v727, %v726
  %v771 = vpack.c.b16 %v729, %v728
  %v772 = vpack.c.b16 %v731, %v730
  %v773 = vpack.c.b16 %v733, %v732
  %v774 = vpack.c.b16 %v735, %v734
  %v775 = vpack.c.b16 %v737, %v736
  %v776 = vpack.c.b16 %v739, %v738
  %v777 = vpack.c.b16 %v741, %v740
  %v778 = vpack.c.b16 %v743, %v742
  %v779 = vpack.c.b16 %v745, %v744
  %v780 = vpack.c.b16 %v747, %v746
  %v781 = vpack.c.b16 %v749, %v748
  %v782 = vpack.c.b16 %v751, %v750
  %v783 = vpack.c.b16 %v753, %v752
  %v784 = vpack.c.b16 %v755, %v754
  %v785 = vpack.c.b16 %v757, %v756
  %v786 = vpack.c.b16 %v759, %v758
  %v787 = vpack.c.b16 %v761, %v760
  %v788 = vpack.c.b16 %v763, %v762
  %v789 = vpack.c.b16 %v765, %v764
  %814 = vmatpush.bf16.msra.mxu0 %v773
  %815 = vmatpush.bf16.msra.mxu0 %v772
  %816 = vmatpush.bf16.msra.mxu0 %v771
  %817 = vmatpush.bf16.msra.mxu0 %v770
  %818 = vmatpush.bf16.msra.mxu0 %v769
  %819 = vmatpush.bf16.msra.mxu0 %v768
  %820 = vmatpush.bf16.msra.mxu0 %v767
  %821 = vmatpush.bf16.msra.mxu0 %v766
  %822 = vmatmul.bf16.gmra.mxu0 %v615
  %v823 = vpop.f32.mrf.mxu0
  %v824 = vadd.f32 0.0, %v823
  %v825 = vpop.f32.mrf.mxu0
  %v826 = vadd.f32 0.0, %v825
  %827 = vmatmul.bf16.gmra.mxu0 %v618
  %v828 = vpop.f32.mrf.mxu0
  %v829 = vadd.f32 0.0, %v828
  %v830 = vpop.f32.mrf.mxu0
  %v831 = vadd.f32 0.0, %v830
  %832 = vdwg.mxu0
  %833 = vmatpush.bf16.msra.mxu0 %v781
  %834 = vmatpush.bf16.msra.mxu0 %v780
  %835 = vmatpush.bf16.msra.mxu0 %v779
  %836 = vmatpush.bf16.msra.mxu0 %v778
  %837 = vmatpush.bf16.msra.mxu0 %v777
  %838 = vmatpush.bf16.msra.mxu0 %v776
  %839 = vmatpush.bf16.msra.mxu0 %v775
  %840 = vmatpush.bf16.msra.mxu0 %v774
  %841 = vmatmul.bf16.gmra.mxu0 %v616
  %v842 = vpop.f32.mrf.mxu0
  %v843 = vadd.f32 %v824, %v842
  %v844 = vpop.f32.mrf.mxu0
  %v845 = vadd.f32 %v826, %v844
  %846 = vmatmul.bf16.gmra.mxu0 %v619
  %v847 = vpop.f32.mrf.mxu0
  %v848 = vadd.f32 %v829, %v847
  %v849 = vpop.f32.mrf.mxu0
  %v850 = vadd.f32 %v831, %v849
  %851 = vdwg.mxu0
  %852 = vmatpush.bf16.msra.mxu0 %v789
  %853 = vmatpush.bf16.msra.mxu0 %v788
  %854 = vmatpush.bf16.msra.mxu0 %v787
  %855 = vmatpush.bf16.msra.mxu0 %v786
  %856 = vmatpush.bf16.msra.mxu0 %v785
  %857 = vmatpush.bf16.msra.mxu0 %v784
  %858 = vmatpush.bf16.msra.mxu0 %v783
  %859 = vmatpush.bf16.msra.mxu0 %v782
  %860 = vmatmul.bf16.gmra.mxu0 %v617
  %v861 = vpop.f32.mrf.mxu0
  %v862 = vadd.f32 %v843, %v861
  %v863 = vpop.f32.mrf.mxu0
  %v864 = vadd.f32 %v845, %v863
  %865 = vmatmul.bf16.gmra.mxu0 %v620
  %v866 = vpop.f32.mrf.mxu0
  %v867 = vadd.f32 %v848, %v866
  %v868 = vpop.f32.mrf.mxu0
  %v869 = vadd.f32 %v850, %v868
  %870 = vdwg.mxu0
  %s871 = scalar_lea.vmem %s2, 4
  %v872 = vld [vmem:[%s871] sm:$0x1]
  %v873 = vperm.slane %v872, 0
  %v874 = vmul.f32 %v862, %v873
  %v875 = vmul.f32 %v864, %v873
  %v876 = vmul.f32 %v867, %v873
  %v877 = vmul.f32 %v869, %v873
  %v878 = vld [vmem:[%s871 + $0x1] sm:$0x1]
  %v879 = vperm.slane %v878, 0
  %v880 = vadd.f32 %v874, %v879
  %v881 = vadd.f32 %v875, %v879
  %v882 = vadd.f32 %v876, %v879
  %v883 = vadd.f32 %v877, %v879
  %v884 = vmax.f32 %v880, 0.0
  %v885 = vmax.f32 %v881, 0.0
  %v886 = vmax.f32 %v882, 0.0
  %v887 = vmax.f32 %v883, 0.0
  %888 = vst [vmem:[#allocation2 + $0x1] sm:$0xff] %v884
  %889 = vst [vmem:[#allocation2 + $0x9] sm:$0xff] %v885
  %890 = vst [vmem:[#allocation2 + $0x13] sm:$0xff] %v886
  %891 = vst [vmem:[#allocation2 + $0x1b] sm:$0xff] %v887
  %v892 = vld [vmem:[#allocation2] sm:$0xff]
  %v893 = vld [vmem:[#allocation2 + $0x8] sm:$0xff]
  %v894 = vld [vmem:[#allocation2 + $0x1] sm:$0xff]
  %v895 = vld [vmem:[#allocation2 + $0x9] sm:$0xff]
  %v896 = vld [vmem:[#allocation2 + $0x2] sm:$0xff]
  %v897 = vld [vmem:[#allocation2 + $0xa] sm:$0xff]
  %v898 = vld [vmem:[#allocation2 + $0x12] sm:$0xff]
  %v899 = vld [vmem:[#allocation2 + $0x1a] sm:$0xff]
  %v900 = vld [vmem:[#allocation2 + $0x13] sm:$0xff]
  %v901 = vld [vmem:[#allocation2 + $0x1b] sm:$0xff]
  %v902 = vld [vmem:[#allocation2 + $0x14] sm:$0xff]
  %v903 = vld [vmem:[#allocation2 + $0x1c] sm:$0xff]
  %v904 = vpack.c.bf16 %v893, %v892
  %v905 = vpack.c.bf16 %v895, %v894
  %v906 = vpack.c.bf16 %v897, %v896
  %v907 = vpack.c.bf16 %v899, %v898
  %v908 = vpack.c.bf16 %v901, %v900
  %v909 = vpack.c.bf16 %v903, %v902
  %s910 = scalar_lea.vmem %s1, 576
  %v911 = vld [vmem:[%s910] sm:$0xf]
  %v912 = vld [vmem:[%s910 + $0x4] sm:$0xf]
  %v913 = vld [vmem:[%s910 + $0x8] sm:$0xf]
  %v914 = vld [vmem:[%s910 + $0xc] sm:$0xf]
  %v915 = vld [vmem:[%s910 + $0x10] sm:$0xf]
  %v916 = vld [vmem:[%s910 + $0x14] sm:$0xf]
  %v917 = vld [vmem:[%s910 + $0x18] sm:$0xf]
  %v918 = vld [vmem:[%s910 + $0x1c] sm:$0xf]
  %v919 = vld [vmem:[%s910 + $0x20] sm:$0xf]
  %v920 = vld [vmem:[%s910 + $0x24] sm:$0xf]
  %v921 = vld [vmem:[%s910 + $0x28] sm:$0xf]
  %v922 = vld [vmem:[%s910 + $0x2c] sm:$0xf]
  %v923 = vld [vmem:[%s910 + $0x30] sm:$0xf]
  %v924 = vld [vmem:[%s910 + $0x34] sm:$0xf]
  %v925 = vld [vmem:[%s910 + $0x38] sm:$0xf]
  %v926 = vld [vmem:[%s910 + $0x3c] sm:$0xf]
  %v927 = vld [vmem:[%s910 + $0x40] sm:$0xf]
  %v928 = vld [vmem:[%s910 + $0x44] sm:$0xf]
  %v929 = vld [vmem:[%s910 + $0x48] sm:$0xf]
  %v930 = vld [vmem:[%s910 + $0x4c] sm:$0xf]
  %v931 = vld [vmem:[%s910 + $0x50] sm:$0xf]
  %v932 = vld [vmem:[%s910 + $0x54] sm:$0xf]
  %v933 = vld [vmem:[%s910 + $0x58] sm:$0xf]
  %v934 = vld [vmem:[%s910 + $0x5c] sm:$0xf]
  %v935 = vld [vmem:[%s910 + $0x60] sm:$0xf]
  %v936 = vld [vmem:[%s910 + $0x64] sm:$0xf]
  %v937 = vld [vmem:[%s910 + $0x68] sm:$0xf]
  %v938 = vld [vmem:[%s910 + $0x6c] sm:$0xf]
  %v939 = vld [vmem:[%s910 + $0x70] sm:$0xf]
  %v940 = vld [vmem:[%s910 + $0x74] sm:$0xf]
  %v941 = vld [vmem:[%s910 + $0x78] sm:$0xf]
  %v942 = vld [vmem:[%s910 + $0x7c] sm:$0xf]
  %v943 = vld [vmem:[%s910 + $0x80] sm:$0xf]
  %v944 = vld [vmem:[%s910 + $0x84] sm:$0xf]
  %v945 = vld [vmem:[%s910 + $0x88] sm:$0xf]
  %v946 = vld [vmem:[%s910 + $0x8c] sm:$0xf]
  %v947 = vld [vmem:[%s910 + $0x90] sm:$0xf]
  %v948 = vld [vmem:[%s910 + $0x94] sm:$0xf]
  %v949 = vld [vmem:[%s910 + $0x98] sm:$0xf]
  %v950 = vld [vmem:[%s910 + $0x9c] sm:$0xf]
  %v951 = vld [vmem:[%s910 + $0xa0] sm:$0xf]
  %v952 = vld [vmem:[%s910 + $0xa4] sm:$0xf]
  %v953 = vld [vmem:[%s910 + $0xa8] sm:$0xf]
  %v954 = vld [vmem:[%s910 + $0xac] sm:$0xf]
  %v955 = vld [vmem:[%s910 + $0xb0] sm:$0xf]
  %v956 = vld [vmem:[%s910 + $0xb4] sm:$0xf]
  %v957 = vld [vmem:[%s910 + $0xb8] sm:$0xf]
  %v958 = vld [vmem:[%s910 + $0xbc] sm:$0xf]
  %v1007 = vunpack.c.l.b16 %v911
  %v1008 = vunpack.c.l.b16 %v912
  %v1009 = vunpack.c.l.b16 %v913
  %v1010 = vunpack.c.l.b16 %v914
  %v1011 = vunpack.c.l.b16 %v915
  %v1012 = vunpack.c.l.b16 %v916
  %v1013 = vunpack.c.l.b16 %v917
  %v1014 = vunpack.c.l.b16 %v918
  %v1015 = vunpack.c.l.b16 %v919
  %v1016 = vunpack.c.l.b16 %v920
  %v1017 = vunpack.c.l.b16 %v921
  %v1018 = vunpack.c.l.b16 %v922
  %v1019 = vunpack.c.l.b16 %v923
  %v1020 = vunpack.c.l.b16 %v924
  %v1021 = vunpack.c.l.b16 %v925
  %v1022 = vunpack.c.l.b16 %v926
  %v1023 = vunpack.c.l.b16 %v927
  %v1024 = vunpack.c.l.b16 %v928
  %v1025 = vunpack.c.l.b16 %v929
  %v1026 = vunpack.c.l.b16 %v930
  %v1027 = vunpack.c.l.b16 %v931
  %v1028 = vunpack.c.l.b16 %v932
  %v1029 = vunpack.c.l.b16 %v933
  %v1030 = vunpack.c.l.b16 %v934
  %v1031 = vunpack.c.l.b16 %v935
  %v1032 = vunpack.c.l.b16 %v936
  %v1033 = vunpack.c.l.b16 %v937
  %v1034 = vunpack.c.l.b16 %v938
  %v1035 = vunpack.c.l.b16 %v939
  %v1036 = vunpack.c.l.b16 %v940
  %v1037 = vunpack.c.l.b16 %v941
  %v1038 = vunpack.c.l.b16 %v942
  %v1039 = vunpack.c.l.b16 %v943
  %v1040 = vunpack.c.l.b16 %v944
  %v1041 = vunpack.c.l.b16 %v945
  %v1042 = vunpack.c.l.b16 %v946
  %v1043 = vunpack.c.l.b16 %v947
  %v1044 = vunpack.c.l.b16 %v948
  %v1045 = vunpack.c.l.b16 %v949
  %v1046 = vunpack.c.l.b16 %v950
  %v1047 = vunpack.c.l.b16 %v951
  %v1048 = vunpack.c.l.b16 %v952
  %v1049 = vunpack.c.l.b16 %v953
  %v1050 = vunpack.c.l.b16 %v954
  %v1051 = vunpack.c.l.b16 %v955
  %v1052 = vunpack.c.l.b16 %v956
  %v1053 = vunpack.c.l.b16 %v957
  %v1054 = vunpack.c.l.b16 %v958
  %v1055 = vpack.c.b16 %v1008, %v1007
  %v1056 = vpack.c.b16 %v1010, %v1009
  %v1057 = vpack.c.b16 %v1012, %v1011
  %v1058 = vpack.c.b16 %v1014, %v1013
  %v1059 = vpack.c.b16 %v1016, %v1015
  %v1060 = vpack.c.b16 %v1018, %v1017
  %v1061 = vpack.c.b16 %v1020, %v1019
  %v1062 = vpack.c.b16 %v1022, %v1021
  %v1063 = vpack.c.b16 %v1024, %v1023
  %v1064 = vpack.c.b16 %v1026, %v1025
  %v1065 = vpack.c.b16 %v1028, %v1027
  %v1066 = vpack.c.b16 %v1030, %v1029
  %v1067 = vpack.c.b16 %v1032, %v1031
  %v1068 = vpack.c.b16 %v1034, %v1033
  %v1069 = vpack.c.b16 %v1036, %v1035
  %v1070 = vpack.c.b16 %v1038, %v1037
  %v1071 = vpack.c.b16 %v1040, %v1039
  %v1072 = vpack.c.b16 %v1042, %v1041
  %v1073 = vpack.c.b16 %v1044, %v1043
  %v1074 = vpack.c.b16 %v1046, %v1045
  %v1075 = vpack.c.b16 %v1048, %v1047
  %v1076 = vpack.c.b16 %v1050, %v1049
  %v1077 = vpack.c.b16 %v1052, %v1051
  %v1078 = vpack.c.b16 %v1054, %v1053
  %1103 = vmatpush.bf16.msra.mxu0 %v1062
  %1104 = vmatpush.bf16.msra.mxu0 %v1061
  %1105 = vmatpush.bf16.msra.mxu0 %v1060
  %1106 = vmatpush.bf16.msra.mxu0 %v1059
  %1107 = vmatpush.bf16.msra.mxu0 %v1058
  %1108 = vmatpush.bf16.msra.mxu0 %v1057
  %1109 = vmatpush.bf16.msra.mxu0 %v1056
  %1110 = vmatpush.bf16.msra.mxu0 %v1055
  %1111 = vmatmul.bf16.gmra.mxu0 %v904
  %v1112 = vpop.f32.mrf.mxu0
  %v1113 = vadd.f32 0.0, %v1112
  %v1114 = vpop.f32.mrf.mxu0
  %v1115 = vadd.f32 0.0, %v1114
  %1116 = vmatmul.bf16.gmra.mxu0 %v907
  %v1117 = vpop.f32.mrf.mxu0
  %v1118 = vadd.f32 0.0, %v1117
  %v1119 = vpop.f32.mrf.mxu0
  %v1120 = vadd.f32 0.0, %v1119
  %1121 = vdwg.mxu0
  %1122 = vmatpush.bf16.msra.mxu0 %v1070
  %1123 = vmatpush.bf16.msra.mxu0 %v1069
  %1124 = vmatpush.bf16.msra.mxu0 %v1068
  %1125 = vmatpush.bf16.msra.mxu0 %v1067
  %1126 = vmatpush.bf16.msra.mxu0 %v1066
  %1127 = vmatpush.bf16.msra.mxu0 %v1065
  %1128 = vmatpush.bf16.msra.mxu0 %v1064
  %1129 = vmatpush.bf16.msra.mxu0 %v1063
  %1130 = vmatmul.bf16.gmra.mxu0 %v905
  %v1131 = vpop.f32.mrf.mxu0
  %v1132 = vadd.f32 %v1113, %v1131
  %v1133 = vpop.f32.mrf.mxu0
  %v1134 = vadd.f32 %v1115, %v1133
  %1135 = vmatmul.bf16.gmra.mxu0 %v908
  %v1136 = vpop.f32.mrf.mxu0
  %v1137 = vadd.f32 %v1118, %v1136
  %v1138 = vpop.f32.mrf.mxu0
  %v1139 = vadd.f32 %v1120, %v1138
  %1140 = vdwg.mxu0
  %1141 = vmatpush.bf16.msra.mxu0 %v1078
  %1142 = vmatpush.bf16.msra.mxu0 %v1077
  %1143 = vmatpush.bf16.msra.mxu0 %v1076
  %1144 = vmatpush.bf16.msra.mxu0 %v1075
  %1145 = vmatpush.bf16.msra.mxu0 %v1074
  %1146 = vmatpush.bf16.msra.mxu0 %v1073
  %1147 = vmatpush.bf16.msra.mxu0 %v1072
  %1148 = vmatpush.bf16.msra.mxu0 %v1071
  %1149 = vmatmul.bf16.gmra.mxu0 %v906
  %v1150 = vpop.f32.mrf.mxu0
  %v1151 = vadd.f32 %v1132, %v1150
  %v1152 = vpop.f32.mrf.mxu0
  %v1153 = vadd.f32 %v1134, %v1152
  %1154 = vmatmul.bf16.gmra.mxu0 %v909
  %v1155 = vpop.f32.mrf.mxu0
  %v1156 = vadd.f32 %v1137, %v1155
  %v1157 = vpop.f32.mrf.mxu0
  %v1158 = vadd.f32 %v1139, %v1157
  %1159 = vdwg.mxu0
  %s1160 = scalar_lea.vmem %s2, 6
  %v1161 = vld [vmem:[%s1160] sm:$0x1]
  %v1162 = vperm.slane %v1161, 0
  %v1163 = vmul.f32 %v1151, %v1162
  %v1164 = vmul.f32 %v1153, %v1162
  %v1165 = vmul.f32 %v1156, %v1162
  %v1166 = vmul.f32 %v1158, %v1162
  %v1167 = vld [vmem:[%s1160 + $0x1] sm:$0x1]
  %v1168 = vperm.slane %v1167, 0
  %v1169 = vadd.f32 %v1163, %v1168
  %v1170 = vadd.f32 %v1164, %v1168
  %v1171 = vadd.f32 %v1165, %v1168
  %v1172 = vadd.f32 %v1166, %v1168
  %v1173 = vmax.f32 %v1169, 0.0
  %v1174 = vmax.f32 %v1170, 0.0
  %v1175 = vmax.f32 %v1171, 0.0
  %v1176 = vmax.f32 %v1172, 0.0
  %1177 = vst [vmem:[%s3] sm:$0xff] %v1173
  %1178 = vst [vmem:[%s3 + $0x8] sm:$0xff] %v1174
  %1179 = vst [vmem:[%s3 + $0x10] sm:$0xff] %v1175
  %1180 = vst [vmem:[%s3 + $0x18] sm:$0xff] %v1176
  // Predicated region
  $region14: #{bignas_roi_head_forward.1} parent=0 // pred_check
    _
  $region15: #{bignas_roi_head_forward.1} parent=0 // pred_check_branch
    %1182 = sbr.rel (0) target = $region17
  $region16: #{bignas_roi_head_forward.1} parent=0 // pred_region
    _
  $region17: #{bignas_roi_head_forward.1} parent=0 // pred_fallthru
    _
  // Predicated region
  $region18: #{bignas_roi_head_forward.1} parent=0 // pred_check
    _
  $region19: #{bignas_roi_head_forward.1} parent=0 // pred_check_branch
    %1184 = sbr.rel (0) target = $region21
  $region20: #{bignas_roi_head_forward.1} parent=0 // pred_region
    _
  $region21: #{bignas_roi_head_forward.1} parent=0 // pred_fallthru
    _

</llo_original>
